<compile_context>
chip_gen: v7x
topology: tpu7x:2x2x1
jax: 0.10.0
libtpu: 0.0.40
codegen_flags: <defaults>
</compile_context>

<pallas_src>
import numpy as np
import jax
import jax.numpy as jnp
from jax.experimental import pallas as pl
from jax.experimental.pallas import tpu as pltpu


def _permutation_selectors(block_size: int, H: int, W: int) -> np.ndarray:
    """sel[k, v, u] = 1  iff  v == (h'*bs + b1)*W + w'*bs + b2,
    with u = h'*Wo + w' and k = b1*bs + b2.  One (H*W, Ho*Wo) one-hot matrix
    per sub-block position: x_row_flat @ sel[k] is the (h', w') output plane."""
    bs = block_size
    Ho, Wo = H // bs, W // bs
    sel = np.zeros((bs * bs, H * W, Ho * Wo), dtype=np.float32)
    hp = np.arange(Ho)[:, None]
    wp = np.arange(Wo)[None, :]
    dst = (hp * Wo + wp).reshape(-1)
    for b1 in range(bs):
        for b2 in range(bs):
            k = b1 * bs + b2
            src = ((hp * bs + b1) * W + wp * bs + b2).reshape(-1)
            sel[k, src, dst] = 1.0
    return sel


def _pick_batch_tile(B, C, HW, itemsize, target_bytes=2 << 20):
    """Largest batch tile tb such that: tb divides B, the input block
    (tb*C, H*W) is layout-legal (second-minor dim a multiple of 8 or the full
    B*C), the per-step input block stays around `target_bytes`, and (when
    possible) the grid keeps >= 2 steps so both TensorCores get work."""
    per_sample = max(1, C * HW * itemsize)
    divisors = [d for d in range(1, B + 1) if B % d == 0]
    legal = [d for d in divisors if (d * C) % 8 == 0 or d == B]
    if not legal:
        legal = [B]
    best = None
    for d in legal:
        if d * per_sample <= target_bytes and (B // d >= 2 or B == 1):
            if best is None or d > best:
                best = d
    if best is None:
        best = min(legal)
    return best


def _s2d_kernel(sel_ref, x_ref, o_ref):
    # sel_ref: (bs^2, H*W, Ho*Wo)   bf16 one-hot permutations (constant block)
    # x_ref  : (tb*C, H*W)          lane-dense input rows for tb samples
    # o_ref  : (tb, bs^2, C, Ho*Wo) lane-dense output planes
    tb, bs2, C, HoWo = o_ref.shape
    xs = x_ref[...]

    if xs.dtype == jnp.float32:
        # Exact f32 copy through the bf16 MXU: x == hi + mid + lo exactly,
        # each part bf16; one-hot selection of each part is exact, and the
        # f32 re-sum reconstructs x bit-exactly.
        hi = xs.astype(jnp.bfloat16)
        r1 = xs - hi.astype(jnp.float32)
        mid = r1.astype(jnp.bfloat16)
        lo = (r1 - mid.astype(jnp.float32)).astype(jnp.bfloat16)
        parts = (hi, mid, lo)
    else:  # bf16: a single exact dot
        parts = (xs,)

    for k in range(bs2):
        sel_k = sel_ref[k]                                    # (H*W, Ho*Wo)
        yk = jnp.dot(parts[0], sel_k, preferred_element_type=jnp.float32)
        for p in parts[1:]:
            yk = yk + jnp.dot(p, sel_k, preferred_element_type=jnp.float32)
        # yk: (tb*C, Ho*Wo), rows ordered (sample, channel) -> place under k.
        o_ref[:, k] = yk.reshape(tb, C, HoWo).astype(o_ref.dtype)


def space_to_depth(x_nchw: jax.Array, block_size: int) -> jax.Array:
    B, C, H, W = x_nchw.shape
    bs = int(block_size)
    assert H % bs == 0 and W % bs == 0, "spatial dims must be divisible by block_size"
    Ho, Wo = H // bs, W // bs
    HW, HoWo = H * W, Ho * Wo
    bs2 = bs * bs
    itemsize = x_nchw.dtype.itemsize

    if x_nchw.dtype not in (jnp.float32, jnp.bfloat16):
        # TODO(synk): non-f32/bf16 dtypes need a non-MXU de-interleave path.
        raise NotImplementedError("space_to_depth Pallas kernel supports f32/bf16")

    sel_bytes = bs2 * HW * HoWo * 2  # selectors are kept in bf16
    assert sel_bytes <= (8 << 20), (
        "spatial map too large for the permutation-matmul variant")

    tb = _pick_batch_tile(B, C, HW, itemsize)
    grid = (B // tb,)

    sel = jnp.asarray(_permutation_selectors(bs, H, W), dtype=jnp.bfloat16)
    x2 = x_nchw.reshape(B * C, HW)                 # free view

    in_block = tb * C * HW * itemsize
    out_block = in_block
    vmem_needed = 2 * (sel_bytes + in_block + out_block) + (8 << 20)
    vmem_limit = int(min(max(vmem_needed, 24 << 20), 48 << 20))

    y4 = pl.pallas_call(
        _s2d_kernel,
        out_shape=jax.ShapeDtypeStruct((B, bs2, C, HoWo), x_nchw.dtype),
        grid=grid,
        in_specs=[
            # Constant selectors: same block every step -> DMA'd once.
            pl.BlockSpec((bs2, HW, HoWo), lambda i: (0, 0, 0)),
            # Lane-dense input rows (tb whole samples per step).
            pl.BlockSpec((tb * C, HW), lambda i: (i, 0)),
        ],
        out_specs=pl.BlockSpec((tb, bs2, C, HoWo), lambda i: (i, 0, 0, 0)),
        compiler_params=pltpu.CompilerParams(
            dimension_semantics=("parallel",),
            vmem_limit_bytes=vmem_limit,
        ),
        cost_estimate=pl.CostEstimate(
            flops=0,
            transcendentals=0,
            bytes_accessed=2 * B * C * HW * itemsize + sel_bytes,
        ),
    )(sel, x2)

    # Free reshape: (B, bs^2, C, Ho*Wo) -> (B, bs^2*C, Ho, Wo); the output
    # channel index is (b1*bs + b2)*C + c, exactly the PyTorch layout.
    return y4.reshape(B, bs2 * C, Ho, Wo)


def space_to_depth_ref(x_nchw: jax.Array, block_size: int) -> jax.Array:
    """Pure-JAX transliteration of the PyTorch forward (verification only)."""
    bs = int(block_size)
    B, C, H, W = x_nchw.shape
    o = jnp.transpose(x_nchw, (0, 2, 3, 1))                   # (B, H, W, C)
    d_depth = C * bs * bs
    d_height = H // bs
    parts = [
        o[:, :, i * bs:(i + 1) * bs, :].reshape(B, d_height, d_depth)
        for i in range(W // bs)
    ]
    out = jnp.stack(parts, axis=1)                             # (B, W//bs, H//bs, d_depth)
    out = jnp.transpose(out, (0, 2, 1, 3))                     # (B, H//bs, W//bs, d_depth)
    out = jnp.transpose(out, (0, 3, 1, 2))                     # (B, d_depth, H//bs, W//bs)
    return out


if __name__ == "__main__":
    key = jax.random.PRNGKey(0)
    B, C, H, W = 2, 4, 16, 16
    block_size = 2

    x = jax.random.normal(key, (B, C, H, W), dtype=jnp.float32)

    y = jax.block_until_ready(space_to_depth(x, block_size))
    y_ref = space_to_depth_ref(x, block_size)

    assert y.shape == (B, C * block_size * block_size, H // block_size, W // block_size), y.shape
    assert y.dtype == x.dtype
    assert bool(jnp.allclose(y, y_ref, rtol=1e-5, atol=1e-5)), "Pallas SpaceToDepth mismatch vs reference"

    print("KERNEL_OK")
</pallas_src>

<mosaic_0001>
module attributes {stable_mosaic.version = 11 : i64} {
  func.func @_s2d_kernel(%arg0: i32, %arg1: memref<4x256x64xbf16, #tpu.memory_space<vmem>>, %arg2: memref<8x256xf32, #tpu.memory_space<vmem>>, %arg3: memref<2x4x4x64xf32, #tpu.memory_space<vmem>>) attributes {dimension_semantics = [#tpu.dimension_semantics<parallel>], iteration_bounds = array<i64: 1>, scalar_prefetch = 0 : i64, scratch_operands = 0 : i64, tpu.core_type = #tpu.core_type<tc>, window_params = [{pipeline_mode = #tpu.pipeline_mode<synchronous>, transform_indices = @transform_0, window_bounds = array<i64: 4, 256, 64>}, {transform_indices = @transform_1, window_bounds = array<i64: 8, 256>}, {transform_indices = @transform_2, window_bounds = array<i64: 2, 4, 4, 64>}]} {
    %c0 = arith.constant 0 : index
    %c0_0 = arith.constant 0 : index
    %0 = vector.load %arg2[%c0, %c0_0] : memref<8x256xf32, #tpu.memory_space<vmem>>, vector<8x256xf32>
    %1 = arith.truncf %0 : vector<8x256xf32> to vector<8x256xbf16>
    %2 = arith.extf %1 : vector<8x256xbf16> to vector<8x256xf32>
    %3 = arith.subf %0, %2 : vector<8x256xf32>
    %4 = arith.truncf %3 : vector<8x256xf32> to vector<8x256xbf16>
    %5 = arith.extf %4 : vector<8x256xbf16> to vector<8x256xf32>
    %6 = arith.subf %3, %5 : vector<8x256xf32>
    %7 = arith.truncf %6 : vector<8x256xf32> to vector<8x256xbf16>
    %c0_1 = arith.constant 0 : index
    %c0_2 = arith.constant 0 : index
    %c0_3 = arith.constant 0 : index
    %8 = vector.load %arg1[%c0_1, %c0_2, %c0_3] : memref<4x256x64xbf16, #tpu.memory_space<vmem>>, vector<1x256x64xbf16>
    %9 = vector.shape_cast %8 : vector<1x256x64xbf16> to vector<256x64xbf16>
    %cst = arith.constant dense<0.000000e+00> : vector<8x64xf32>
    %10 = tpu.matmul %1, %9, %cst {dimension_numbers = #tpu.dot_dimension_numbers<[1], [0], [0], [1], [0, 0, 1, 1], [], []>} : vector<8x256xbf16>, vector<256x64xbf16>, vector<8x64xf32> -> vector<8x64xf32>
    %cst_4 = arith.constant dense<0.000000e+00> : vector<8x64xf32>
    %11 = tpu.matmul %4, %9, %cst_4 {dimension_numbers = #tpu.dot_dimension_numbers<[1], [0], [0], [1], [0, 0, 1, 1], [], []>} : vector<8x256xbf16>, vector<256x64xbf16>, vector<8x64xf32> -> vector<8x64xf32>
    %12 = arith.addf %10, %11 : vector<8x64xf32>
    %cst_5 = arith.constant dense<0.000000e+00> : vector<8x64xf32>
    %13 = tpu.matmul %7, %9, %cst_5 {dimension_numbers = #tpu.dot_dimension_numbers<[1], [0], [0], [1], [0, 0, 1, 1], [], []>} : vector<8x256xbf16>, vector<256x64xbf16>, vector<8x64xf32> -> vector<8x64xf32>
    %14 = arith.addf %12, %13 : vector<8x64xf32>
    %15 = vector.shape_cast %14 : vector<8x64xf32> to vector<2x4x64xf32>
    %c0_6 = arith.constant 0 : index
    %c0_7 = arith.constant 0 : index
    %c0_8 = arith.constant 0 : index
    %c0_9 = arith.constant 0 : index
    %16 = vector.load %arg3[%c0_6, %c0_7, %c0_8, %c0_9] : memref<2x4x4x64xf32, #tpu.memory_space<vmem>>, vector<2x1x4x64xf32>
    %17 = vector.shape_cast %16 : vector<2x1x4x64xf32> to vector<2x4x64xf32>
    %18 = vector.shape_cast %15 : vector<2x4x64xf32> to vector<2x1x4x64xf32>
    tpu.vector_store %arg3[%c0_6, %c0_7, %c0_8, %c0_9], %18 {strides = array<i32>} : memref<2x4x4x64xf32, #tpu.memory_space<vmem>>, vector<2x1x4x64xf32>,
    %c1 = arith.constant 1 : index
    %c0_10 = arith.constant 0 : index
    %c0_11 = arith.constant 0 : index
    %19 = vector.load %arg1[%c1, %c0_10, %c0_11] : memref<4x256x64xbf16, #tpu.memory_space<vmem>>, vector<1x256x64xbf16>
    %20 = vector.shape_cast %19 : vector<1x256x64xbf16> to vector<256x64xbf16>
    %cst_12 = arith.constant dense<0.000000e+00> : vector<8x64xf32>
    %21 = tpu.matmul %1, %20, %cst_12 {dimension_numbers = #tpu.dot_dimension_numbers<[1], [0], [0], [1], [0, 0, 1, 1], [], []>} : vector<8x256xbf16>, vector<256x64xbf16>, vector<8x64xf32> -> vector<8x64xf32>
    %cst_13 = arith.constant dense<0.000000e+00> : vector<8x64xf32>
    %22 = tpu.matmul %4, %20, %cst_13 {dimension_numbers = #tpu.dot_dimension_numbers<[1], [0], [0], [1], [0, 0, 1, 1], [], []>} : vector<8x256xbf16>, vector<256x64xbf16>, vector<8x64xf32> -> vector<8x64xf32>
    %23 = arith.addf %21, %22 : vector<8x64xf32>
    %cst_14 = arith.constant dense<0.000000e+00> : vector<8x64xf32>
    %24 = tpu.matmul %7, %20, %cst_14 {dimension_numbers = #tpu.dot_dimension_numbers<[1], [0], [0], [1], [0, 0, 1, 1], [], []>} : vector<8x256xbf16>, vector<256x64xbf16>, vector<8x64xf32> -> vector<8x64xf32>
    %25 = arith.addf %23, %24 : vector<8x64xf32>
    %26 = vector.shape_cast %25 : vector<8x64xf32> to vector<2x4x64xf32>
    %c0_15 = arith.constant 0 : index
    %c1_16 = arith.constant 1 : index
    %c0_17 = arith.constant 0 : index
    %c0_18 = arith.constant 0 : index
    %27 = vector.load %arg3[%c0_15, %c1_16, %c0_17, %c0_18] : memref<2x4x4x64xf32, #tpu.memory_space<vmem>>, vector<2x1x4x64xf32>
    %28 = vector.shape_cast %27 : vector<2x1x4x64xf32> to vector<2x4x64xf32>
    %29 = vector.shape_cast %26 : vector<2x4x64xf32> to vector<2x1x4x64xf32>
    tpu.vector_store %arg3[%c0_15, %c1_16, %c0_17, %c0_18], %29 {strides = array<i32>} : memref<2x4x4x64xf32, #tpu.memory_space<vmem>>, vector<2x1x4x64xf32>,
    %c2 = arith.constant 2 : index
    %c0_19 = arith.constant 0 : index
    %c0_20 = arith.constant 0 : index
    %30 = vector.load %arg1[%c2, %c0_19, %c0_20] : memref<4x256x64xbf16, #tpu.memory_space<vmem>>, vector<1x256x64xbf16>
    %31 = vector.shape_cast %30 : vector<1x256x64xbf16> to vector<256x64xbf16>
    %cst_21 = arith.constant dense<0.000000e+00> : vector<8x64xf32>
    %32 = tpu.matmul %1, %31, %cst_21 {dimension_numbers = #tpu.dot_dimension_numbers<[1], [0], [0], [1], [0, 0, 1, 1], [], []>} : vector<8x256xbf16>, vector<256x64xbf16>, vector<8x64xf32> -> vector<8x64xf32>
    %cst_22 = arith.constant dense<0.000000e+00> : vector<8x64xf32>
    %33 = tpu.matmul %4, %31, %cst_22 {dimension_numbers = #tpu.dot_dimension_numbers<[1], [0], [0], [1], [0, 0, 1, 1], [], []>} : vector<8x256xbf16>, vector<256x64xbf16>, vector<8x64xf32> -> vector<8x64xf32>
    %34 = arith.addf %32, %33 : vector<8x64xf32>
    %cst_23 = arith.constant dense<0.000000e+00> : vector<8x64xf32>
    %35 = tpu.matmul %7, %31, %cst_23 {dimension_numbers = #tpu.dot_dimension_numbers<[1], [0], [0], [1], [0, 0, 1, 1], [], []>} : vector<8x256xbf16>, vector<256x64xbf16>, vector<8x64xf32> -> vector<8x64xf32>
    %36 = arith.addf %34, %35 : vector<8x64xf32>
    %37 = vector.shape_cast %36 : vector<8x64xf32> to vector<2x4x64xf32>
    %c0_24 = arith.constant 0 : index
    %c2_25 = arith.constant 2 : index
    %c0_26 = arith.constant 0 : index
    %c0_27 = arith.constant 0 : index
    %38 = vector.load %arg3[%c0_24, %c2_25, %c0_26, %c0_27] : memref<2x4x4x64xf32, #tpu.memory_space<vmem>>, vector<2x1x4x64xf32>
    %39 = vector.shape_cast %38 : vector<2x1x4x64xf32> to vector<2x4x64xf32>
    %40 = vector.shape_cast %37 : vector<2x4x64xf32> to vector<2x1x4x64xf32>
    tpu.vector_store %arg3[%c0_24, %c2_25, %c0_26, %c0_27], %40 {strides = array<i32>} : memref<2x4x4x64xf32, #tpu.memory_space<vmem>>, vector<2x1x4x64xf32>,
    %c3 = arith.constant 3 : index
    %c0_28 = arith.constant 0 : index
    %c0_29 = arith.constant 0 : index
    %41 = vector.load %arg1[%c3, %c0_28, %c0_29] : memref<4x256x64xbf16, #tpu.memory_space<vmem>>, vector<1x256x64xbf16>
    %42 = vector.shape_cast %41 : vector<1x256x64xbf16> to vector<256x64xbf16>
    %cst_30 = arith.constant dense<0.000000e+00> : vector<8x64xf32>
    %43 = tpu.matmul %1, %42, %cst_30 {dimension_numbers = #tpu.dot_dimension_numbers<[1], [0], [0], [1], [0, 0, 1, 1], [], []>} : vector<8x256xbf16>, vector<256x64xbf16>, vector<8x64xf32> -> vector<8x64xf32>
    %cst_31 = arith.constant dense<0.000000e+00> : vector<8x64xf32>
    %44 = tpu.matmul %4, %42, %cst_31 {dimension_numbers = #tpu.dot_dimension_numbers<[1], [0], [0], [1], [0, 0, 1, 1], [], []>} : vector<8x256xbf16>, vector<256x64xbf16>, vector<8x64xf32> -> vector<8x64xf32>
    %45 = arith.addf %43, %44 : vector<8x64xf32>
    %cst_32 = arith.constant dense<0.000000e+00> : vector<8x64xf32>
    %46 = tpu.matmul %7, %42, %cst_32 {dimension_numbers = #tpu.dot_dimension_numbers<[1], [0], [0], [1], [0, 0, 1, 1], [], []>} : vector<8x256xbf16>, vector<256x64xbf16>, vector<8x64xf32> -> vector<8x64xf32>
    %47 = arith.addf %45, %46 : vector<8x64xf32>
    %48 = vector.shape_cast %47 : vector<8x64xf32> to vector<2x4x64xf32>
    %c0_33 = arith.constant 0 : index
    %c3_34 = arith.constant 3 : index
    %c0_35 = arith.constant 0 : index
    %c0_36 = arith.constant 0 : index
    %49 = vector.load %arg3[%c0_33, %c3_34, %c0_35, %c0_36] : memref<2x4x4x64xf32, #tpu.memory_space<vmem>>, vector<2x1x4x64xf32>
    %50 = vector.shape_cast %49 : vector<2x1x4x64xf32> to vector<2x4x64xf32>
    %51 = vector.shape_cast %48 : vector<2x4x64xf32> to vector<2x1x4x64xf32>
    tpu.vector_store %arg3[%c0_33, %c3_34, %c0_35, %c0_36], %51 {strides = array<i32>} : memref<2x4x4x64xf32, #tpu.memory_space<vmem>>, vector<2x1x4x64xf32>,
    return
  }
  func.func @transform_0(%arg0: i32) -> (i32, i32, i32) {
    %c0_i32 = arith.constant 0 : i32
    %c0_i32_0 = arith.constant 0 : i32
    %c0_i32_1 = arith.constant 0 : i32
    %c0_i32_2 = arith.constant 0 : i32
    return %c0_i32, %c0_i32_0, %c0_i32_1 : i32, i32, i32
  }
  func.func @transform_1(%arg0: i32) -> (i32, i32) {
    %c0_i32 = arith.constant 0 : i32
    %c0_i32_0 = arith.constant 0 : i32
    return %arg0, %c0_i32 : i32, i32
  }
  func.func @transform_2(%arg0: i32) -> (i32, i32, i32, i32) {
    %c0_i32 = arith.constant 0 : i32
    %c0_i32_0 = arith.constant 0 : i32
    %c0_i32_1 = arith.constant 0 : i32
    %c0_i32_2 = arith.constant 0 : i32
    return %arg0, %c0_i32, %c0_i32_0, %c0_i32_1 : i32, i32, i32, i32
  }
}

</mosaic_0001>

<llo_original>
// kernel: tpu_custom_call.1
$region0: #{tpu_custom_call.1}
  #allocation0 [shape = 'u32[]', space=smem, size = 0x4, offset = 0x4, fixed_abs, tag = 'smem constant byte address 0x4 - core index']
  #allocation1 [shape = 'u32[144,128]{1,0:T(1,128)}', space=vmem, size = 0x12000, scoped, tag = 'internal scratch']
  %s0 = inlined_call_operand.vmem [shape: bf16[4,256,64], index: 0, kind: input, shape index: {}]
  %s1 = inlined_call_operand.vmem [shape: f32[8,256], index: 1, kind: input, shape index: {}]
  %s2 = inlined_call_operand.hbm [shape: f32[2,4,4,64], index: 2, kind: output, shape index: {}]
  %s3 = sld [smem:[#allocation0]]
  $region18: #{tpu_custom_call.1} parent=0
    _
  %s5 = ssub.s32 1, %s3
  %s6 = scalar_select 0, %s5, %s3
  $region1: #{tpu_custom_call.1} parent=0
    #allocation2 [shape = 'u8[16384]{0}', space=vmem, size = 0x4000, scoped, tag = 'output window, operand 0, single buffered']
    #allocation3 [shape = 's32[1]{0}', space=sflag, size = 0x4, scoped, tag = 'scoped memory for tpu_custom_call.1']
    %7 = vsyncpa [#allocation3], 0
    // Predicated region
    $region2: #{tpu_custom_call.1} parent=1 // pred_check
      _
    $region3: #{tpu_custom_call.1} parent=1 // pred_check_branch
      %9 = sbr.rel (0) target = $region5
    $region4: #{tpu_custom_call.1} parent=1 // pred_region
      _
    $region5: #{tpu_custom_call.1} parent=1 // pred_fallthru
      _
    // Predicated region
    $region6: #{tpu_custom_call.1} parent=1 // pred_check
      _
    $region7: #{tpu_custom_call.1} parent=1 // pred_check_branch
      %11 = sbr.rel (0) target = $region9
    $region8: #{tpu_custom_call.1} parent=1 // pred_region
      _
    $region9: #{tpu_custom_call.1} parent=1 // pred_fallthru
      _
    %v13 = vld [vmem:[%s1] sm:$0xff]
    %v14 = vld [vmem:[%s1 + $0x8] sm:$0xff]
    %v15 = vpack.c.bf16 %v13, %v13
    %v16 = vpack.c.bf16 %v14, %v14
    %v17 = vunpack.c.l.bf16 %v15
    %v18 = vunpack.c.l.bf16 %v16
    %v19 = vsub.f32 %v13, %v17
    %v20 = vsub.f32 %v14, %v18
    %v21 = vpack.c.bf16 %v19, %v19
    %v22 = vpack.c.bf16 %v20, %v20
    %v23 = vunpack.c.l.bf16 %v21
    %v24 = vunpack.c.l.bf16 %v22
    %v25 = vsub.f32 %v19, %v23
    %v26 = vsub.f32 %v20, %v24
    %v27 = vpack.c.bf16 %v25, %v25
    %v28 = vpack.c.bf16 %v26, %v26
    %v29 = vld [vmem:[%s0] sm:$0xf]
    %v30 = vld [vmem:[%s0 + $0x4] sm:$0xf]
    %v31 = vld [vmem:[%s0 + $0x8] sm:$0xf]
    %v32 = vld [vmem:[%s0 + $0xc] sm:$0xf]
    %v33 = vld [vmem:[%s0 + $0x10] sm:$0xf]
    %v34 = vld [vmem:[%s0 + $0x14] sm:$0xf]
    %v35 = vld [vmem:[%s0 + $0x18] sm:$0xf]
    %v36 = vld [vmem:[%s0 + $0x1c] sm:$0xf]
    %v37 = vld [vmem:[%s0 + $0x20] sm:$0xf]
    %v38 = vld [vmem:[%s0 + $0x24] sm:$0xf]
    %v39 = vld [vmem:[%s0 + $0x28] sm:$0xf]
    %v40 = vld [vmem:[%s0 + $0x2c] sm:$0xf]
    %v41 = vld [vmem:[%s0 + $0x30] sm:$0xf]
    %v42 = vld [vmem:[%s0 + $0x34] sm:$0xf]
    %v43 = vld [vmem:[%s0 + $0x38] sm:$0xf]
    %v44 = vld [vmem:[%s0 + $0x3c] sm:$0xf]
    %v45 = vld [vmem:[%s0 + $0x40] sm:$0xf]
    %v46 = vld [vmem:[%s0 + $0x44] sm:$0xf]
    %v47 = vld [vmem:[%s0 + $0x48] sm:$0xf]
    %v48 = vld [vmem:[%s0 + $0x4c] sm:$0xf]
    %v49 = vld [vmem:[%s0 + $0x50] sm:$0xf]
    %v50 = vld [vmem:[%s0 + $0x54] sm:$0xf]
    %v51 = vld [vmem:[%s0 + $0x58] sm:$0xf]
    %v52 = vld [vmem:[%s0 + $0x5c] sm:$0xf]
    %v53 = vld [vmem:[%s0 + $0x60] sm:$0xf]
    %v54 = vld [vmem:[%s0 + $0x64] sm:$0xf]
    %v55 = vld [vmem:[%s0 + $0x68] sm:$0xf]
    %v56 = vld [vmem:[%s0 + $0x6c] sm:$0xf]
    %v57 = vld [vmem:[%s0 + $0x70] sm:$0xf]
    %v58 = vld [vmem:[%s0 + $0x74] sm:$0xf]
    %v59 = vld [vmem:[%s0 + $0x78] sm:$0xf]
    %v60 = vld [vmem:[%s0 + $0x7c] sm:$0xf]
    %v93 = vunpack.c.l.b16 %v29
    %v94 = vunpack.c.l.b16 %v30
    %v95 = vunpack.c.l.b16 %v31
    %v96 = vunpack.c.l.b16 %v32
    %v97 = vunpack.c.l.b16 %v33
    %v98 = vunpack.c.l.b16 %v34
    %v99 = vunpack.c.l.b16 %v35
    %v100 = vunpack.c.l.b16 %v36
    %v101 = vunpack.c.l.b16 %v37
    %v102 = vunpack.c.l.b16 %v38
    %v103 = vunpack.c.l.b16 %v39
    %v104 = vunpack.c.l.b16 %v40
    %v105 = vunpack.c.l.b16 %v41
    %v106 = vunpack.c.l.b16 %v42
    %v107 = vunpack.c.l.b16 %v43
    %v108 = vunpack.c.l.b16 %v44
    %v109 = vunpack.c.l.b16 %v45
    %v110 = vunpack.c.l.b16 %v46
    %v111 = vunpack.c.l.b16 %v47
    %v112 = vunpack.c.l.b16 %v48
    %v113 = vunpack.c.l.b16 %v49
    %v114 = vunpack.c.l.b16 %v50
    %v115 = vunpack.c.l.b16 %v51
    %v116 = vunpack.c.l.b16 %v52
    %v117 = vunpack.c.l.b16 %v53
    %v118 = vunpack.c.l.b16 %v54
    %v119 = vunpack.c.l.b16 %v55
    %v120 = vunpack.c.l.b16 %v56
    %v121 = vunpack.c.l.b16 %v57
    %v122 = vunpack.c.l.b16 %v58
    %v123 = vunpack.c.l.b16 %v59
    %v124 = vunpack.c.l.b16 %v60
    %v125 = vpack.c.b16 %v94, %v93
    %v126 = vpack.c.b16 %v96, %v95
    %v127 = vpack.c.b16 %v98, %v97
    %v128 = vpack.c.b16 %v100, %v99
    %v129 = vpack.c.b16 %v102, %v101
    %v130 = vpack.c.b16 %v104, %v103
    %v131 = vpack.c.b16 %v106, %v105
    %v132 = vpack.c.b16 %v108, %v107
    %v133 = vpack.c.b16 %v110, %v109
    %v134 = vpack.c.b16 %v112, %v111
    %v135 = vpack.c.b16 %v114, %v113
    %v136 = vpack.c.b16 %v116, %v115
    %v137 = vpack.c.b16 %v118, %v117
    %v138 = vpack.c.b16 %v120, %v119
    %v139 = vpack.c.b16 %v122, %v121
    %v140 = vpack.c.b16 %v124, %v123
    %157 = vmatprep.subr.bf16.mxu0 0
    %158 = vmatpush1.bf16.msra.mxu0 %v125
    %159 = vmatprep.subr.bf16.mxu0 0
    %160 = vmatpush1.bf16.msra.mxu0 %v126
    %161 = vmatprep.subr.bf16.mxu0 0
    %162 = vmatpush1.bf16.msra.mxu0 %v127
    %163 = vmatprep.subr.bf16.mxu0 0
    %164 = vmatpush1.bf16.msra.mxu0 %v128
    %165 = vmatprep.subr.bf16.mxu0 0
    %166 = vmatpush1.bf16.msra.mxu0 %v129
    %167 = vmatprep.subr.bf16.mxu0 0
    %168 = vmatpush1.bf16.msra.mxu0 %v130
    %169 = vmatprep.subr.bf16.mxu0 0
    %170 = vmatpush1.bf16.msra.mxu0 %v131
    %171 = vmatprep.subr.bf16.mxu0 0
    %172 = vmatpush1.bf16.msra.mxu0 %v132
    %173 = vmatprep.subr.bf16.mxu0 0
    %174 = vmatpush1.bf16.msra.mxu0 %v133
    %175 = vmatprep.subr.bf16.mxu0 0
    %176 = vmatpush1.bf16.msra.mxu0 %v134
    %177 = vmatprep.subr.bf16.mxu0 0
    %178 = vmatpush1.bf16.msra.mxu0 %v135
    %179 = vmatprep.subr.bf16.mxu0 0
    %180 = vmatpush1.bf16.msra.mxu0 %v136
    %181 = vmatprep.subr.bf16.mxu0 0
    %182 = vmatpush1.bf16.msra.mxu0 %v137
    %183 = vmatprep.subr.bf16.mxu0 0
    %184 = vmatpush1.bf16.msra.mxu0 %v138
    %185 = vmatprep.subr.bf16.mxu0 0
    %186 = vmatpush1.bf16.msra.mxu0 %v139
    %187 = vmatprep.subr.bf16.mxu0 0
    %188 = vmatpush1.bf16.msra.mxu0 %v140
    %189 = vmatprep.mubr.bf16.mxu0 %v22
    %190 = vmatmul.mubr.bf16.gmra.mrb[0].mxu0 %v21
    %v191 = vpop.f32.mrb[0].mxu0
    %v192 = vadd.f32 0.0, %v191
    %v193 = vpop.f32.mrb[0].mxu0
    %v194 = vpop.f32.mrb[0].mxu0
    %v195 = vpop.f32.mrb[0].mxu0
    %196 = vdwg.mxu0
    %197 = vmatprep.subr.bf16.mxu0 0
    %198 = vmatpush1.bf16.msra.mxu0 %v125
    %199 = vmatprep.subr.bf16.mxu0 0
    %200 = vmatpush1.bf16.msra.mxu0 %v126
    %201 = vmatprep.subr.bf16.mxu0 0
    %202 = vmatpush1.bf16.msra.mxu0 %v127
    %203 = vmatprep.subr.bf16.mxu0 0
    %204 = vmatpush1.bf16.msra.mxu0 %v128
    %205 = vmatprep.subr.bf16.mxu0 0
    %206 = vmatpush1.bf16.msra.mxu0 %v129
    %207 = vmatprep.subr.bf16.mxu0 0
    %208 = vmatpush1.bf16.msra.mxu0 %v130
    %209 = vmatprep.subr.bf16.mxu0 0
    %210 = vmatpush1.bf16.msra.mxu0 %v131
    %211 = vmatprep.subr.bf16.mxu0 0
    %212 = vmatpush1.bf16.msra.mxu0 %v132
    %213 = vmatprep.subr.bf16.mxu0 0
    %214 = vmatpush1.bf16.msra.mxu0 %v133
    %215 = vmatprep.subr.bf16.mxu0 0
    %216 = vmatpush1.bf16.msra.mxu0 %v134
    %217 = vmatprep.subr.bf16.mxu0 0
    %218 = vmatpush1.bf16.msra.mxu0 %v135
    %219 = vmatprep.subr.bf16.mxu0 0
    %220 = vmatpush1.bf16.msra.mxu0 %v136
    %221 = vmatprep.subr.bf16.mxu0 0
    %222 = vmatpush1.bf16.msra.mxu0 %v137
    %223 = vmatprep.subr.bf16.mxu0 0
    %224 = vmatpush1.bf16.msra.mxu0 %v138
    %225 = vmatprep.subr.bf16.mxu0 0
    %226 = vmatpush1.bf16.msra.mxu0 %v139
    %227 = vmatprep.subr.bf16.mxu0 0
    %228 = vmatpush1.bf16.msra.mxu0 %v140
    %229 = vmatprep.mubr.bf16.mxu0 %v16
    %230 = vmatmul.mubr.bf16.gmra.mrb[0].mxu0 %v15
    %v231 = vpop.f32.mrb[0].mxu0
    %v232 = vadd.f32 %v192, %v231
    %v233 = vpop.f32.mrb[0].mxu0
    %v234 = vpop.f32.mrb[0].mxu0
    %v235 = vpop.f32.mrb[0].mxu0
    %236 = vdwg.mxu0
    %237 = vmatprep.subr.bf16.mxu0 0
    %238 = vmatpush1.bf16.msra.mxu0 %v125
    %239 = vmatprep.subr.bf16.mxu0 0
    %240 = vmatpush1.bf16.msra.mxu0 %v126
    %241 = vmatprep.subr.bf16.mxu0 0
    %242 = vmatpush1.bf16.msra.mxu0 %v127
    %243 = vmatprep.subr.bf16.mxu0 0
    %244 = vmatpush1.bf16.msra.mxu0 %v128
    %245 = vmatprep.subr.bf16.mxu0 0
    %246 = vmatpush1.bf16.msra.mxu0 %v129
    %247 = vmatprep.subr.bf16.mxu0 0
    %248 = vmatpush1.bf16.msra.mxu0 %v130
    %249 = vmatprep.subr.bf16.mxu0 0
    %250 = vmatpush1.bf16.msra.mxu0 %v131
    %251 = vmatprep.subr.bf16.mxu0 0
    %252 = vmatpush1.bf16.msra.mxu0 %v132
    %253 = vmatprep.subr.bf16.mxu0 0
    %254 = vmatpush1.bf16.msra.mxu0 %v133
    %255 = vmatprep.subr.bf16.mxu0 0
    %256 = vmatpush1.bf16.msra.mxu0 %v134
    %257 = vmatprep.subr.bf16.mxu0 0
    %258 = vmatpush1.bf16.msra.mxu0 %v135
    %259 = vmatprep.subr.bf16.mxu0 0
    %260 = vmatpush1.bf16.msra.mxu0 %v136
    %261 = vmatprep.subr.bf16.mxu0 0
    %262 = vmatpush1.bf16.msra.mxu0 %v137
    %263 = vmatprep.subr.bf16.mxu0 0
    %264 = vmatpush1.bf16.msra.mxu0 %v138
    %265 = vmatprep.subr.bf16.mxu0 0
    %266 = vmatpush1.bf16.msra.mxu0 %v139
    %267 = vmatprep.subr.bf16.mxu0 0
    %268 = vmatpush1.bf16.msra.mxu0 %v140
    %269 = vmatprep.mubr.bf16.mxu0 %v28
    %270 = vmatmul.mubr.bf16.gmra.mrb[0].mxu0 %v27
    %v271 = vpop.f32.mrb[0].mxu0
    %v272 = vadd.f32 0.0, %v271
    %v273 = vpop.f32.mrb[0].mxu0
    %v274 = vpop.f32.mrb[0].mxu0
    %v275 = vpop.f32.mrb[0].mxu0
    %276 = vdwg.mxu0
    %v277 = vadd.f32 %v232, %v272
    %v279 = vcombine.high %v277, %v277
    %vm281 = vcmask 519168
    %282 = vst.msk [vmem:[#allocation2] sm:$0xf] %vm281, %v277
    %283 = vst.msk [vmem:[#allocation2 + $0x10] sm:$0xf] %vm281, %v279
    %s284 = scalar_lea.vmem %s0, 128
    %v285 = vld [vmem:[%s284] sm:$0xf]
    %v286 = vld [vmem:[%s284 + $0x4] sm:$0xf]
    %v287 = vld [vmem:[%s284 + $0x8] sm:$0xf]
    %v288 = vld [vmem:[%s284 + $0xc] sm:$0xf]
    %v289 = vld [vmem:[%s284 + $0x10] sm:$0xf]
    %v290 = vld [vmem:[%s284 + $0x14] sm:$0xf]
    %v291 = vld [vmem:[%s284 + $0x18] sm:$0xf]
    %v292 = vld [vmem:[%s284 + $0x1c] sm:$0xf]
    %v293 = vld [vmem:[%s284 + $0x20] sm:$0xf]
    %v294 = vld [vmem:[%s284 + $0x24] sm:$0xf]
    %v295 = vld [vmem:[%s284 + $0x28] sm:$0xf]
    %v296 = vld [vmem:[%s284 + $0x2c] sm:$0xf]
    %v297 = vld [vmem:[%s284 + $0x30] sm:$0xf]
    %v298 = vld [vmem:[%s284 + $0x34] sm:$0xf]
    %v299 = vld [vmem:[%s284 + $0x38] sm:$0xf]
    %v300 = vld [vmem:[%s284 + $0x3c] sm:$0xf]
    %v301 = vld [vmem:[%s284 + $0x40] sm:$0xf]
    %v302 = vld [vmem:[%s284 + $0x44] sm:$0xf]
    %v303 = vld [vmem:[%s284 + $0x48] sm:$0xf]
    %v304 = vld [vmem:[%s284 + $0x4c] sm:$0xf]
    %v305 = vld [vmem:[%s284 + $0x50] sm:$0xf]
    %v306 = vld [vmem:[%s284 + $0x54] sm:$0xf]
    %v307 = vld [vmem:[%s284 + $0x58] sm:$0xf]
    %v308 = vld [vmem:[%s284 + $0x5c] sm:$0xf]
    %v309 = vld [vmem:[%s284 + $0x60] sm:$0xf]
    %v310 = vld [vmem:[%s284 + $0x64] sm:$0xf]
    %v311 = vld [vmem:[%s284 + $0x68] sm:$0xf]
    %v312 = vld [vmem:[%s284 + $0x6c] sm:$0xf]
    %v313 = vld [vmem:[%s284 + $0x70] sm:$0xf]
    %v314 = vld [vmem:[%s284 + $0x74] sm:$0xf]
    %v315 = vld [vmem:[%s284 + $0x78] sm:$0xf]
    %v316 = vld [vmem:[%s284 + $0x7c] sm:$0xf]
    %v349 = vunpack.c.l.b16 %v285
    %v350 = vunpack.c.l.b16 %v286
    %v351 = vunpack.c.l.b16 %v287
    %v352 = vunpack.c.l.b16 %v288
    %v353 = vunpack.c.l.b16 %v289
    %v354 = vunpack.c.l.b16 %v290
    %v355 = vunpack.c.l.b16 %v291
    %v356 = vunpack.c.l.b16 %v292
    %v357 = vunpack.c.l.b16 %v293
    %v358 = vunpack.c.l.b16 %v294
    %v359 = vunpack.c.l.b16 %v295
    %v360 = vunpack.c.l.b16 %v296
    %v361 = vunpack.c.l.b16 %v297
    %v362 = vunpack.c.l.b16 %v298
    %v363 = vunpack.c.l.b16 %v299
    %v364 = vunpack.c.l.b16 %v300
    %v365 = vunpack.c.l.b16 %v301
    %v366 = vunpack.c.l.b16 %v302
    %v367 = vunpack.c.l.b16 %v303
    %v368 = vunpack.c.l.b16 %v304
    %v369 = vunpack.c.l.b16 %v305
    %v370 = vunpack.c.l.b16 %v306
    %v371 = vunpack.c.l.b16 %v307
    %v372 = vunpack.c.l.b16 %v308
    %v373 = vunpack.c.l.b16 %v309
    %v374 = vunpack.c.l.b16 %v310
    %v375 = vunpack.c.l.b16 %v311
    %v376 = vunpack.c.l.b16 %v312
    %v377 = vunpack.c.l.b16 %v313
    %v378 = vunpack.c.l.b16 %v314
    %v379 = vunpack.c.l.b16 %v315
    %v380 = vunpack.c.l.b16 %v316
    %v381 = vpack.c.b16 %v350, %v349
    %v382 = vpack.c.b16 %v352, %v351
    %v383 = vpack.c.b16 %v354, %v353
    %v384 = vpack.c.b16 %v356, %v355
    %v385 = vpack.c.b16 %v358, %v357
    %v386 = vpack.c.b16 %v360, %v359
    %v387 = vpack.c.b16 %v362, %v361
    %v388 = vpack.c.b16 %v364, %v363
    %v389 = vpack.c.b16 %v366, %v365
    %v390 = vpack.c.b16 %v368, %v367
    %v391 = vpack.c.b16 %v370, %v369
    %v392 = vpack.c.b16 %v372, %v371
    %v393 = vpack.c.b16 %v374, %v373
    %v394 = vpack.c.b16 %v376, %v375
    %v395 = vpack.c.b16 %v378, %v377
    %v396 = vpack.c.b16 %v380, %v379
    %413 = vmatprep.subr.bf16.mxu0 0
    %414 = vmatpush1.bf16.msra.mxu0 %v381
    %415 = vmatprep.subr.bf16.mxu0 0
    %416 = vmatpush1.bf16.msra.mxu0 %v382
    %417 = vmatprep.subr.bf16.mxu0 0
    %418 = vmatpush1.bf16.msra.mxu0 %v383
    %419 = vmatprep.subr.bf16.mxu0 0
    %420 = vmatpush1.bf16.msra.mxu0 %v384
    %421 = vmatprep.subr.bf16.mxu0 0
    %422 = vmatpush1.bf16.msra.mxu0 %v385
    %423 = vmatprep.subr.bf16.mxu0 0
    %424 = vmatpush1.bf16.msra.mxu0 %v386
    %425 = vmatprep.subr.bf16.mxu0 0
    %426 = vmatpush1.bf16.msra.mxu0 %v387
    %427 = vmatprep.subr.bf16.mxu0 0
    %428 = vmatpush1.bf16.msra.mxu0 %v388
    %429 = vmatprep.subr.bf16.mxu0 0
    %430 = vmatpush1.bf16.msra.mxu0 %v389
    %431 = vmatprep.subr.bf16.mxu0 0
    %432 = vmatpush1.bf16.msra.mxu0 %v390
    %433 = vmatprep.subr.bf16.mxu0 0
    %434 = vmatpush1.bf16.msra.mxu0 %v391
    %435 = vmatprep.subr.bf16.mxu0 0
    %436 = vmatpush1.bf16.msra.mxu0 %v392
    %437 = vmatprep.subr.bf16.mxu0 0
    %438 = vmatpush1.bf16.msra.mxu0 %v393
    %439 = vmatprep.subr.bf16.mxu0 0
    %440 = vmatpush1.bf16.msra.mxu0 %v394
    %441 = vmatprep.subr.bf16.mxu0 0
    %442 = vmatpush1.bf16.msra.mxu0 %v395
    %443 = vmatprep.subr.bf16.mxu0 0
    %444 = vmatpush1.bf16.msra.mxu0 %v396
    %445 = vmatprep.mubr.bf16.mxu0 %v22
    %446 = vmatmul.mubr.bf16.gmra.mrb[0].mxu0 %v21
    %v447 = vpop.f32.mrb[0].mxu0
    %v448 = vadd.f32 0.0, %v447
    %v449 = vpop.f32.mrb[0].mxu0
    %v450 = vpop.f32.mrb[0].mxu0
    %v451 = vpop.f32.mrb[0].mxu0
    %452 = vdwg.mxu0
    %453 = vmatprep.subr.bf16.mxu0 0
    %454 = vmatpush1.bf16.msra.mxu0 %v381
    %455 = vmatprep.subr.bf16.mxu0 0
    %456 = vmatpush1.bf16.msra.mxu0 %v382
    %457 = vmatprep.subr.bf16.mxu0 0
    %458 = vmatpush1.bf16.msra.mxu0 %v383
    %459 = vmatprep.subr.bf16.mxu0 0
    %460 = vmatpush1.bf16.msra.mxu0 %v384
    %461 = vmatprep.subr.bf16.mxu0 0
    %462 = vmatpush1.bf16.msra.mxu0 %v385
    %463 = vmatprep.subr.bf16.mxu0 0
    %464 = vmatpush1.bf16.msra.mxu0 %v386
    %465 = vmatprep.subr.bf16.mxu0 0
    %466 = vmatpush1.bf16.msra.mxu0 %v387
    %467 = vmatprep.subr.bf16.mxu0 0
    %468 = vmatpush1.bf16.msra.mxu0 %v388
    %469 = vmatprep.subr.bf16.mxu0 0
    %470 = vmatpush1.bf16.msra.mxu0 %v389
    %471 = vmatprep.subr.bf16.mxu0 0
    %472 = vmatpush1.bf16.msra.mxu0 %v390
    %473 = vmatprep.subr.bf16.mxu0 0
    %474 = vmatpush1.bf16.msra.mxu0 %v391
    %475 = vmatprep.subr.bf16.mxu0 0
    %476 = vmatpush1.bf16.msra.mxu0 %v392
    %477 = vmatprep.subr.bf16.mxu0 0
    %478 = vmatpush1.bf16.msra.mxu0 %v393
    %479 = vmatprep.subr.bf16.mxu0 0
    %480 = vmatpush1.bf16.msra.mxu0 %v394
    %481 = vmatprep.subr.bf16.mxu0 0
    %482 = vmatpush1.bf16.msra.mxu0 %v395
    %483 = vmatprep.subr.bf16.mxu0 0
    %484 = vmatpush1.bf16.msra.mxu0 %v396
    %485 = vmatprep.mubr.bf16.mxu0 %v16
    %486 = vmatmul.mubr.bf16.gmra.mrb[0].mxu0 %v15
    %v487 = vpop.f32.mrb[0].mxu0
    %v488 = vadd.f32 %v448, %v487
    %v489 = vpop.f32.mrb[0].mxu0
    %v490 = vpop.f32.mrb[0].mxu0
    %v491 = vpop.f32.mrb[0].mxu0
    %492 = vdwg.mxu0
    %493 = vmatprep.subr.bf16.mxu0 0
    %494 = vmatpush1.bf16.msra.mxu0 %v381
    %495 = vmatprep.subr.bf16.mxu0 0
    %496 = vmatpush1.bf16.msra.mxu0 %v382
    %497 = vmatprep.subr.bf16.mxu0 0
    %498 = vmatpush1.bf16.msra.mxu0 %v383
    %499 = vmatprep.subr.bf16.mxu0 0
    %500 = vmatpush1.bf16.msra.mxu0 %v384
    %501 = vmatprep.subr.bf16.mxu0 0
    %502 = vmatpush1.bf16.msra.mxu0 %v385
    %503 = vmatprep.subr.bf16.mxu0 0
    %504 = vmatpush1.bf16.msra.mxu0 %v386
    %505 = vmatprep.subr.bf16.mxu0 0
    %506 = vmatpush1.bf16.msra.mxu0 %v387
    %507 = vmatprep.subr.bf16.mxu0 0
    %508 = vmatpush1.bf16.msra.mxu0 %v388
    %509 = vmatprep.subr.bf16.mxu0 0
    %510 = vmatpush1.bf16.msra.mxu0 %v389
    %511 = vmatprep.subr.bf16.mxu0 0
    %512 = vmatpush1.bf16.msra.mxu0 %v390
    %513 = vmatprep.subr.bf16.mxu0 0
    %514 = vmatpush1.bf16.msra.mxu0 %v391
    %515 = vmatprep.subr.bf16.mxu0 0
    %516 = vmatpush1.bf16.msra.mxu0 %v392
    %517 = vmatprep.subr.bf16.mxu0 0
    %518 = vmatpush1.bf16.msra.mxu0 %v393
    %519 = vmatprep.subr.bf16.mxu0 0
    %520 = vmatpush1.bf16.msra.mxu0 %v394
    %521 = vmatprep.subr.bf16.mxu0 0
    %522 = vmatpush1.bf16.msra.mxu0 %v395
    %523 = vmatprep.subr.bf16.mxu0 0
    %524 = vmatpush1.bf16.msra.mxu0 %v396
    %525 = vmatprep.mubr.bf16.mxu0 %v28
    %526 = vmatmul.mubr.bf16.gmra.mrb[0].mxu0 %v27
    %v527 = vpop.f32.mrb[0].mxu0
    %v528 = vadd.f32 0.0, %v527
    %v529 = vpop.f32.mrb[0].mxu0
    %v530 = vpop.f32.mrb[0].mxu0
    %v531 = vpop.f32.mrb[0].mxu0
    %532 = vdwg.mxu0
    %v533 = vadd.f32 %v488, %v528
    %v535 = vcombine.high %v533, %v533
    %s537 = scalar_lea.vmem [#allocation2], 4
    %538 = vst.msk [vmem:[%s537] sm:$0xf] %vm281, %v533
    %539 = vst.msk [vmem:[%s537 + $0x10] sm:$0xf] %vm281, %v535
    %s540 = scalar_lea.vmem %s0, 256
    %v541 = vld [vmem:[%s540] sm:$0xf]
    %v542 = vld [vmem:[%s540 + $0x4] sm:$0xf]
    %v543 = vld [vmem:[%s540 + $0x8] sm:$0xf]
    %v544 = vld [vmem:[%s540 + $0xc] sm:$0xf]
    %v545 = vld [vmem:[%s540 + $0x10] sm:$0xf]
    %v546 = vld [vmem:[%s540 + $0x14] sm:$0xf]
    %v547 = vld [vmem:[%s540 + $0x18] sm:$0xf]
    %v548 = vld [vmem:[%s540 + $0x1c] sm:$0xf]
    %v549 = vld [vmem:[%s540 + $0x20] sm:$0xf]
    %v550 = vld [vmem:[%s540 + $0x24] sm:$0xf]
    %v551 = vld [vmem:[%s540 + $0x28] sm:$0xf]
    %v552 = vld [vmem:[%s540 + $0x2c] sm:$0xf]
    %v553 = vld [vmem:[%s540 + $0x30] sm:$0xf]
    %v554 = vld [vmem:[%s540 + $0x34] sm:$0xf]
    %v555 = vld [vmem:[%s540 + $0x38] sm:$0xf]
    %v556 = vld [vmem:[%s540 + $0x3c] sm:$0xf]
    %v557 = vld [vmem:[%s540 + $0x40] sm:$0xf]
    %v558 = vld [vmem:[%s540 + $0x44] sm:$0xf]
    %v559 = vld [vmem:[%s540 + $0x48] sm:$0xf]
    %v560 = vld [vmem:[%s540 + $0x4c] sm:$0xf]
    %v561 = vld [vmem:[%s540 + $0x50] sm:$0xf]
    %v562 = vld [vmem:[%s540 + $0x54] sm:$0xf]
    %v563 = vld [vmem:[%s540 + $0x58] sm:$0xf]
    %v564 = vld [vmem:[%s540 + $0x5c] sm:$0xf]
    %v565 = vld [vmem:[%s540 + $0x60] sm:$0xf]
    %v566 = vld [vmem:[%s540 + $0x64] sm:$0xf]
    %v567 = vld [vmem:[%s540 + $0x68] sm:$0xf]
    %v568 = vld [vmem:[%s540 + $0x6c] sm:$0xf]
    %v569 = vld [vmem:[%s540 + $0x70] sm:$0xf]
    %v570 = vld [vmem:[%s540 + $0x74] sm:$0xf]
    %v571 = vld [vmem:[%s540 + $0x78] sm:$0xf]
    %v572 = vld [vmem:[%s540 + $0x7c] sm:$0xf]
    %v605 = vunpack.c.l.b16 %v541
    %v606 = vunpack.c.l.b16 %v542
    %v607 = vunpack.c.l.b16 %v543
    %v608 = vunpack.c.l.b16 %v544
    %v609 = vunpack.c.l.b16 %v545
    %v610 = vunpack.c.l.b16 %v546
    %v611 = vunpack.c.l.b16 %v547
    %v612 = vunpack.c.l.b16 %v548
    %v613 = vunpack.c.l.b16 %v549
    %v614 = vunpack.c.l.b16 %v550
    %v615 = vunpack.c.l.b16 %v551
    %v616 = vunpack.c.l.b16 %v552
    %v617 = vunpack.c.l.b16 %v553
    %v618 = vunpack.c.l.b16 %v554
    %v619 = vunpack.c.l.b16 %v555
    %v620 = vunpack.c.l.b16 %v556
    %v621 = vunpack.c.l.b16 %v557
    %v622 = vunpack.c.l.b16 %v558
    %v623 = vunpack.c.l.b16 %v559
    %v624 = vunpack.c.l.b16 %v560
    %v625 = vunpack.c.l.b16 %v561
    %v626 = vunpack.c.l.b16 %v562
    %v627 = vunpack.c.l.b16 %v563
    %v628 = vunpack.c.l.b16 %v564
    %v629 = vunpack.c.l.b16 %v565
    %v630 = vunpack.c.l.b16 %v566
    %v631 = vunpack.c.l.b16 %v567
    %v632 = vunpack.c.l.b16 %v568
    %v633 = vunpack.c.l.b16 %v569
    %v634 = vunpack.c.l.b16 %v570
    %v635 = vunpack.c.l.b16 %v571
    %v636 = vunpack.c.l.b16 %v572
    %v637 = vpack.c.b16 %v606, %v605
    %v638 = vpack.c.b16 %v608, %v607
    %v639 = vpack.c.b16 %v610, %v609
    %v640 = vpack.c.b16 %v612, %v611
    %v641 = vpack.c.b16 %v614, %v613
    %v642 = vpack.c.b16 %v616, %v615
    %v643 = vpack.c.b16 %v618, %v617
    %v644 = vpack.c.b16 %v620, %v619
    %v645 = vpack.c.b16 %v622, %v621
    %v646 = vpack.c.b16 %v624, %v623
    %v647 = vpack.c.b16 %v626, %v625
    %v648 = vpack.c.b16 %v628, %v627
    %v649 = vpack.c.b16 %v630, %v629
    %v650 = vpack.c.b16 %v632, %v631
    %v651 = vpack.c.b16 %v634, %v633
    %v652 = vpack.c.b16 %v636, %v635
    %669 = vmatprep.subr.bf16.mxu0 0
    %670 = vmatpush1.bf16.msra.mxu0 %v637
    %671 = vmatprep.subr.bf16.mxu0 0
    %672 = vmatpush1.bf16.msra.mxu0 %v638
    %673 = vmatprep.subr.bf16.mxu0 0
    %674 = vmatpush1.bf16.msra.mxu0 %v639
    %675 = vmatprep.subr.bf16.mxu0 0
    %676 = vmatpush1.bf16.msra.mxu0 %v640
    %677 = vmatprep.subr.bf16.mxu0 0
    %678 = vmatpush1.bf16.msra.mxu0 %v641
    %679 = vmatprep.subr.bf16.mxu0 0
    %680 = vmatpush1.bf16.msra.mxu0 %v642
    %681 = vmatprep.subr.bf16.mxu0 0
    %682 = vmatpush1.bf16.msra.mxu0 %v643
    %683 = vmatprep.subr.bf16.mxu0 0
    %684 = vmatpush1.bf16.msra.mxu0 %v644
    %685 = vmatprep.subr.bf16.mxu0 0
    %686 = vmatpush1.bf16.msra.mxu0 %v645
    %687 = vmatprep.subr.bf16.mxu0 0
    %688 = vmatpush1.bf16.msra.mxu0 %v646
    %689 = vmatprep.subr.bf16.mxu0 0
    %690 = vmatpush1.bf16.msra.mxu0 %v647
    %691 = vmatprep.subr.bf16.mxu0 0
    %692 = vmatpush1.bf16.msra.mxu0 %v648
    %693 = vmatprep.subr.bf16.mxu0 0
    %694 = vmatpush1.bf16.msra.mxu0 %v649
    %695 = vmatprep.subr.bf16.mxu0 0
    %696 = vmatpush1.bf16.msra.mxu0 %v650
    %697 = vmatprep.subr.bf16.mxu0 0
    %698 = vmatpush1.bf16.msra.mxu0 %v651
    %699 = vmatprep.subr.bf16.mxu0 0
    %700 = vmatpush1.bf16.msra.mxu0 %v652
    %701 = vmatprep.mubr.bf16.mxu0 %v22
    %702 = vmatmul.mubr.bf16.gmra.mrb[0].mxu0 %v21
    %v703 = vpop.f32.mrb[0].mxu0
    %v704 = vadd.f32 0.0, %v703
    %v705 = vpop.f32.mrb[0].mxu0
    %v706 = vpop.f32.mrb[0].mxu0
    %v707 = vpop.f32.mrb[0].mxu0
    %708 = vdwg.mxu0
    %709 = vmatprep.subr.bf16.mxu0 0
    %710 = vmatpush1.bf16.msra.mxu0 %v637
    %711 = vmatprep.subr.bf16.mxu0 0
    %712 = vmatpush1.bf16.msra.mxu0 %v638
    %713 = vmatprep.subr.bf16.mxu0 0
    %714 = vmatpush1.bf16.msra.mxu0 %v639
    %715 = vmatprep.subr.bf16.mxu0 0
    %716 = vmatpush1.bf16.msra.mxu0 %v640
    %717 = vmatprep.subr.bf16.mxu0 0
    %718 = vmatpush1.bf16.msra.mxu0 %v641
    %719 = vmatprep.subr.bf16.mxu0 0
    %720 = vmatpush1.bf16.msra.mxu0 %v642
    %721 = vmatprep.subr.bf16.mxu0 0
    %722 = vmatpush1.bf16.msra.mxu0 %v643
    %723 = vmatprep.subr.bf16.mxu0 0
    %724 = vmatpush1.bf16.msra.mxu0 %v644
    %725 = vmatprep.subr.bf16.mxu0 0
    %726 = vmatpush1.bf16.msra.mxu0 %v645
    %727 = vmatprep.subr.bf16.mxu0 0
    %728 = vmatpush1.bf16.msra.mxu0 %v646
    %729 = vmatprep.subr.bf16.mxu0 0
    %730 = vmatpush1.bf16.msra.mxu0 %v647
    %731 = vmatprep.subr.bf16.mxu0 0
    %732 = vmatpush1.bf16.msra.mxu0 %v648
    %733 = vmatprep.subr.bf16.mxu0 0
    %734 = vmatpush1.bf16.msra.mxu0 %v649
    %735 = vmatprep.subr.bf16.mxu0 0
    %736 = vmatpush1.bf16.msra.mxu0 %v650
    %737 = vmatprep.subr.bf16.mxu0 0
    %738 = vmatpush1.bf16.msra.mxu0 %v651
    %739 = vmatprep.subr.bf16.mxu0 0
    %740 = vmatpush1.bf16.msra.mxu0 %v652
    %741 = vmatprep.mubr.bf16.mxu0 %v16
    %742 = vmatmul.mubr.bf16.gmra.mrb[0].mxu0 %v15
    %v743 = vpop.f32.mrb[0].mxu0
    %v744 = vadd.f32 %v704, %v743
    %v745 = vpop.f32.mrb[0].mxu0
    %v746 = vpop.f32.mrb[0].mxu0
    %v747 = vpop.f32.mrb[0].mxu0
    %748 = vdwg.mxu0
    %749 = vmatprep.subr.bf16.mxu0 0
    %750 = vmatpush1.bf16.msra.mxu0 %v637
    %751 = vmatprep.subr.bf16.mxu0 0
    %752 = vmatpush1.bf16.msra.mxu0 %v638
    %753 = vmatprep.subr.bf16.mxu0 0
    %754 = vmatpush1.bf16.msra.mxu0 %v639
    %755 = vmatprep.subr.bf16.mxu0 0
    %756 = vmatpush1.bf16.msra.mxu0 %v640
    %757 = vmatprep.subr.bf16.mxu0 0
    %758 = vmatpush1.bf16.msra.mxu0 %v641
    %759 = vmatprep.subr.bf16.mxu0 0
    %760 = vmatpush1.bf16.msra.mxu0 %v642
    %761 = vmatprep.subr.bf16.mxu0 0
    %762 = vmatpush1.bf16.msra.mxu0 %v643
    %763 = vmatprep.subr.bf16.mxu0 0
    %764 = vmatpush1.bf16.msra.mxu0 %v644
    %765 = vmatprep.subr.bf16.mxu0 0
    %766 = vmatpush1.bf16.msra.mxu0 %v645
    %767 = vmatprep.subr.bf16.mxu0 0
    %768 = vmatpush1.bf16.msra.mxu0 %v646
    %769 = vmatprep.subr.bf16.mxu0 0
    %770 = vmatpush1.bf16.msra.mxu0 %v647
    %771 = vmatprep.subr.bf16.mxu0 0
    %772 = vmatpush1.bf16.msra.mxu0 %v648
    %773 = vmatprep.subr.bf16.mxu0 0
    %774 = vmatpush1.bf16.msra.mxu0 %v649
    %775 = vmatprep.subr.bf16.mxu0 0
    %776 = vmatpush1.bf16.msra.mxu0 %v650
    %777 = vmatprep.subr.bf16.mxu0 0
    %778 = vmatpush1.bf16.msra.mxu0 %v651
    %779 = vmatprep.subr.bf16.mxu0 0
    %780 = vmatpush1.bf16.msra.mxu0 %v652
    %781 = vmatprep.mubr.bf16.mxu0 %v28
    %782 = vmatmul.mubr.bf16.gmra.mrb[0].mxu0 %v27
    %v783 = vpop.f32.mrb[0].mxu0
    %v784 = vadd.f32 0.0, %v783
    %v785 = vpop.f32.mrb[0].mxu0
    %v786 = vpop.f32.mrb[0].mxu0
    %v787 = vpop.f32.mrb[0].mxu0
    %788 = vdwg.mxu0
    %v789 = vadd.f32 %v744, %v784
    %v791 = vcombine.high %v789, %v789
    %s793 = scalar_lea.vmem [#allocation2], 8
    %794 = vst.msk [vmem:[%s793] sm:$0xf] %vm281, %v789
    %795 = vst.msk [vmem:[%s793 + $0x10] sm:$0xf] %vm281, %v791
    %s796 = scalar_lea.vmem %s0, 384
    %v797 = vld [vmem:[%s796] sm:$0xf]
    %v798 = vld [vmem:[%s796 + $0x4] sm:$0xf]
    %v799 = vld [vmem:[%s796 + $0x8] sm:$0xf]
    %v800 = vld [vmem:[%s796 + $0xc] sm:$0xf]
    %v801 = vld [vmem:[%s796 + $0x10] sm:$0xf]
    %v802 = vld [vmem:[%s796 + $0x14] sm:$0xf]
    %v803 = vld [vmem:[%s796 + $0x18] sm:$0xf]
    %v804 = vld [vmem:[%s796 + $0x1c] sm:$0xf]
    %v805 = vld [vmem:[%s796 + $0x20] sm:$0xf]
    %v806 = vld [vmem:[%s796 + $0x24] sm:$0xf]
    %v807 = vld [vmem:[%s796 + $0x28] sm:$0xf]
    %v808 = vld [vmem:[%s796 + $0x2c] sm:$0xf]
    %v809 = vld [vmem:[%s796 + $0x30] sm:$0xf]
    %v810 = vld [vmem:[%s796 + $0x34] sm:$0xf]
    %v811 = vld [vmem:[%s796 + $0x38] sm:$0xf]
    %v812 = vld [vmem:[%s796 + $0x3c] sm:$0xf]
    %v813 = vld [vmem:[%s796 + $0x40] sm:$0xf]
    %v814 = vld [vmem:[%s796 + $0x44] sm:$0xf]
    %v815 = vld [vmem:[%s796 + $0x48] sm:$0xf]
    %v816 = vld [vmem:[%s796 + $0x4c] sm:$0xf]
    %v817 = vld [vmem:[%s796 + $0x50] sm:$0xf]
    %v818 = vld [vmem:[%s796 + $0x54] sm:$0xf]
    %v819 = vld [vmem:[%s796 + $0x58] sm:$0xf]
    %v820 = vld [vmem:[%s796 + $0x5c] sm:$0xf]
    %v821 = vld [vmem:[%s796 + $0x60] sm:$0xf]
    %v822 = vld [vmem:[%s796 + $0x64] sm:$0xf]
    %v823 = vld [vmem:[%s796 + $0x68] sm:$0xf]
    %v824 = vld [vmem:[%s796 + $0x6c] sm:$0xf]
    %v825 = vld [vmem:[%s796 + $0x70] sm:$0xf]
    %v826 = vld [vmem:[%s796 + $0x74] sm:$0xf]
    %v827 = vld [vmem:[%s796 + $0x78] sm:$0xf]
    %v828 = vld [vmem:[%s796 + $0x7c] sm:$0xf]
    %v861 = vunpack.c.l.b16 %v797
    %v862 = vunpack.c.l.b16 %v798
    %v863 = vunpack.c.l.b16 %v799
    %v864 = vunpack.c.l.b16 %v800
    %v865 = vunpack.c.l.b16 %v801
    %v866 = vunpack.c.l.b16 %v802
    %v867 = vunpack.c.l.b16 %v803
    %v868 = vunpack.c.l.b16 %v804
    %v869 = vunpack.c.l.b16 %v805
    %v870 = vunpack.c.l.b16 %v806
    %v871 = vunpack.c.l.b16 %v807
    %v872 = vunpack.c.l.b16 %v808
    %v873 = vunpack.c.l.b16 %v809
    %v874 = vunpack.c.l.b16 %v810
    %v875 = vunpack.c.l.b16 %v811
    %v876 = vunpack.c.l.b16 %v812
    %v877 = vunpack.c.l.b16 %v813
    %v878 = vunpack.c.l.b16 %v814
    %v879 = vunpack.c.l.b16 %v815
    %v880 = vunpack.c.l.b16 %v816
    %v881 = vunpack.c.l.b16 %v817
    %v882 = vunpack.c.l.b16 %v818
    %v883 = vunpack.c.l.b16 %v819
    %v884 = vunpack.c.l.b16 %v820
    %v885 = vunpack.c.l.b16 %v821
    %v886 = vunpack.c.l.b16 %v822
    %v887 = vunpack.c.l.b16 %v823
    %v888 = vunpack.c.l.b16 %v824
    %v889 = vunpack.c.l.b16 %v825
    %v890 = vunpack.c.l.b16 %v826
    %v891 = vunpack.c.l.b16 %v827
    %v892 = vunpack.c.l.b16 %v828
    %v893 = vpack.c.b16 %v862, %v861
    %v894 = vpack.c.b16 %v864, %v863
    %v895 = vpack.c.b16 %v866, %v865
    %v896 = vpack.c.b16 %v868, %v867
    %v897 = vpack.c.b16 %v870, %v869
    %v898 = vpack.c.b16 %v872, %v871
    %v899 = vpack.c.b16 %v874, %v873
    %v900 = vpack.c.b16 %v876, %v875
    %v901 = vpack.c.b16 %v878, %v877
    %v902 = vpack.c.b16 %v880, %v879
    %v903 = vpack.c.b16 %v882, %v881
    %v904 = vpack.c.b16 %v884, %v883
    %v905 = vpack.c.b16 %v886, %v885
    %v906 = vpack.c.b16 %v888, %v887
    %v907 = vpack.c.b16 %v890, %v889
    %v908 = vpack.c.b16 %v892, %v891
    %925 = vmatprep.subr.bf16.mxu0 0
    %926 = vmatpush1.bf16.msra.mxu0 %v893
    %927 = vmatprep.subr.bf16.mxu0 0
    %928 = vmatpush1.bf16.msra.mxu0 %v894
    %929 = vmatprep.subr.bf16.mxu0 0
    %930 = vmatpush1.bf16.msra.mxu0 %v895
    %931 = vmatprep.subr.bf16.mxu0 0
    %932 = vmatpush1.bf16.msra.mxu0 %v896
    %933 = vmatprep.subr.bf16.mxu0 0
    %934 = vmatpush1.bf16.msra.mxu0 %v897
    %935 = vmatprep.subr.bf16.mxu0 0
    %936 = vmatpush1.bf16.msra.mxu0 %v898
    %937 = vmatprep.subr.bf16.mxu0 0
    %938 = vmatpush1.bf16.msra.mxu0 %v899
    %939 = vmatprep.subr.bf16.mxu0 0
    %940 = vmatpush1.bf16.msra.mxu0 %v900
    %941 = vmatprep.subr.bf16.mxu0 0
    %942 = vmatpush1.bf16.msra.mxu0 %v901
    %943 = vmatprep.subr.bf16.mxu0 0
    %944 = vmatpush1.bf16.msra.mxu0 %v902
    %945 = vmatprep.subr.bf16.mxu0 0
    %946 = vmatpush1.bf16.msra.mxu0 %v903
    %947 = vmatprep.subr.bf16.mxu0 0
    %948 = vmatpush1.bf16.msra.mxu0 %v904
    %949 = vmatprep.subr.bf16.mxu0 0
    %950 = vmatpush1.bf16.msra.mxu0 %v905
    %951 = vmatprep.subr.bf16.mxu0 0
    %952 = vmatpush1.bf16.msra.mxu0 %v906
    %953 = vmatprep.subr.bf16.mxu0 0
    %954 = vmatpush1.bf16.msra.mxu0 %v907
    %955 = vmatprep.subr.bf16.mxu0 0
    %956 = vmatpush1.bf16.msra.mxu0 %v908
    %957 = vmatprep.mubr.bf16.mxu0 %v22
    %958 = vmatmul.mubr.bf16.gmra.mrb[0].mxu0 %v21
    %v959 = vpop.f32.mrb[0].mxu0
    %v960 = vadd.f32 0.0, %v959
    %v961 = vpop.f32.mrb[0].mxu0
    %v962 = vpop.f32.mrb[0].mxu0
    %v963 = vpop.f32.mrb[0].mxu0
    %964 = vdwg.mxu0
    %965 = vmatprep.subr.bf16.mxu0 0
    %966 = vmatpush1.bf16.msra.mxu0 %v893
    %967 = vmatprep.subr.bf16.mxu0 0
    %968 = vmatpush1.bf16.msra.mxu0 %v894
    %969 = vmatprep.subr.bf16.mxu0 0
    %970 = vmatpush1.bf16.msra.mxu0 %v895
    %971 = vmatprep.subr.bf16.mxu0 0
    %972 = vmatpush1.bf16.msra.mxu0 %v896
    %973 = vmatprep.subr.bf16.mxu0 0
    %974 = vmatpush1.bf16.msra.mxu0 %v897
    %975 = vmatprep.subr.bf16.mxu0 0
    %976 = vmatpush1.bf16.msra.mxu0 %v898
    %977 = vmatprep.subr.bf16.mxu0 0
    %978 = vmatpush1.bf16.msra.mxu0 %v899
    %979 = vmatprep.subr.bf16.mxu0 0
    %980 = vmatpush1.bf16.msra.mxu0 %v900
    %981 = vmatprep.subr.bf16.mxu0 0
    %982 = vmatpush1.bf16.msra.mxu0 %v901
    %983 = vmatprep.subr.bf16.mxu0 0
    %984 = vmatpush1.bf16.msra.mxu0 %v902
    %985 = vmatprep.subr.bf16.mxu0 0
    %986 = vmatpush1.bf16.msra.mxu0 %v903
    %987 = vmatprep.subr.bf16.mxu0 0
    %988 = vmatpush1.bf16.msra.mxu0 %v904
    %989 = vmatprep.subr.bf16.mxu0 0
    %990 = vmatpush1.bf16.msra.mxu0 %v905
    %991 = vmatprep.subr.bf16.mxu0 0
    %992 = vmatpush1.bf16.msra.mxu0 %v906
    %993 = vmatprep.subr.bf16.mxu0 0
    %994 = vmatpush1.bf16.msra.mxu0 %v907
    %995 = vmatprep.subr.bf16.mxu0 0
    %996 = vmatpush1.bf16.msra.mxu0 %v908
    %997 = vmatprep.mubr.bf16.mxu0 %v16
    %998 = vmatmul.mubr.bf16.gmra.mrb[0].mxu0 %v15
    %v999 = vpop.f32.mrb[0].mxu0
    %v1000 = vadd.f32 %v960, %v999
    %v1001 = vpop.f32.mrb[0].mxu0
    %v1002 = vpop.f32.mrb[0].mxu0
    %v1003 = vpop.f32.mrb[0].mxu0
    %1004 = vdwg.mxu0
    %1005 = vmatprep.subr.bf16.mxu0 0
    %1006 = vmatpush1.bf16.msra.mxu0 %v893
    %1007 = vmatprep.subr.bf16.mxu0 0
    %1008 = vmatpush1.bf16.msra.mxu0 %v894
    %1009 = vmatprep.subr.bf16.mxu0 0
    %1010 = vmatpush1.bf16.msra.mxu0 %v895
    %1011 = vmatprep.subr.bf16.mxu0 0
    %1012 = vmatpush1.bf16.msra.mxu0 %v896
    %1013 = vmatprep.subr.bf16.mxu0 0
    %1014 = vmatpush1.bf16.msra.mxu0 %v897
    %1015 = vmatprep.subr.bf16.mxu0 0
    %1016 = vmatpush1.bf16.msra.mxu0 %v898
    %1017 = vmatprep.subr.bf16.mxu0 0
    %1018 = vmatpush1.bf16.msra.mxu0 %v899
    %1019 = vmatprep.subr.bf16.mxu0 0
    %1020 = vmatpush1.bf16.msra.mxu0 %v900
    %1021 = vmatprep.subr.bf16.mxu0 0
    %1022 = vmatpush1.bf16.msra.mxu0 %v901
    %1023 = vmatprep.subr.bf16.mxu0 0
    %1024 = vmatpush1.bf16.msra.mxu0 %v902
    %1025 = vmatprep.subr.bf16.mxu0 0
    %1026 = vmatpush1.bf16.msra.mxu0 %v903
    %1027 = vmatprep.subr.bf16.mxu0 0
    %1028 = vmatpush1.bf16.msra.mxu0 %v904
    %1029 = vmatprep.subr.bf16.mxu0 0
    %1030 = vmatpush1.bf16.msra.mxu0 %v905
    %1031 = vmatprep.subr.bf16.mxu0 0
    %1032 = vmatpush1.bf16.msra.mxu0 %v906
    %1033 = vmatprep.subr.bf16.mxu0 0
    %1034 = vmatpush1.bf16.msra.mxu0 %v907
    %1035 = vmatprep.subr.bf16.mxu0 0
    %1036 = vmatpush1.bf16.msra.mxu0 %v908
    %1037 = vmatprep.mubr.bf16.mxu0 %v28
    %1038 = vmatmul.mubr.bf16.gmra.mrb[0].mxu0 %v27
    %v1039 = vpop.f32.mrb[0].mxu0
    %v1040 = vadd.f32 0.0, %v1039
    %v1041 = vpop.f32.mrb[0].mxu0
    %v1042 = vpop.f32.mrb[0].mxu0
    %v1043 = vpop.f32.mrb[0].mxu0
    %1044 = vdwg.mxu0
    %v1045 = vadd.f32 %v1000, %v1040
    %v1047 = vcombine.high %v1045, %v1045
    %s1049 = scalar_lea.vmem [#allocation2], 12
    %1050 = vst.msk [vmem:[%s1049] sm:$0xf] %vm281, %v1045
    %1051 = vst.msk [vmem:[%s1049 + $0x10] sm:$0xf] %vm281, %v1047
    // Predicated region
    $region10: #{tpu_custom_call.1} parent=1 // pred_check
      _
    $region11: #{tpu_custom_call.1} parent=1 // pred_check_branch
      %1053 = sbr.rel (0) target = $region13
    $region12: #{tpu_custom_call.1} parent=1 // pred_region
      %s1055 = ssub.s32 512, 512
      %1056 = vsyncadd [#allocation3], %s1055
      %s1057 = sshll.u32 [#allocation2], 4
      %s1058 = int_to_ptr.vmem [resolvable:$true] %s1057
      %1063 = dma.vmem_to_hbm [thread:$0]  %s1058, 512, %s2, [#allocation3], 64, 64, 4
    $region13: #{tpu_custom_call.1} parent=1 // pred_fallthru
      _
    // Predicated region
    $region14: #{tpu_custom_call.1} parent=1 // pred_check
      _
    $region15: #{tpu_custom_call.1} parent=1 // pred_check_branch
      %1065 = sbr.rel (0) target = $region17
    $region16: #{tpu_custom_call.1} parent=1 // pred_region
      %1066 = dma.done [#allocation3], 512
    $region17: #{tpu_custom_call.1} parent=1 // pred_fallthru
      _
    %1067 = vsyncpa [#allocation3], 1

</llo_original>
